<compile_context>
chip_gen: v7x
topology: tpu7x:2x2x1
jax: 0.10.0
libtpu: 0.0.40
codegen_flags: <defaults>
</compile_context>

<pallas_src>
import functools

import jax
import jax.numpy as jnp
from jax import lax
from jax.experimental import pallas as pl
from jax.experimental.pallas import tpu as pltpu

EPS = 1e-12
VMEM_LIMIT_BYTES = 40 * 1024 * 1024   # headroom on v7x (64 MiB); fine on v5e/v6e


def _round_up(x, m):
    return ((x + m - 1) // m) * m


def _pad2d(a, rows, cols):
    r, c = a.shape
    if r == rows and c == cols:
        return a
    return jnp.pad(a, ((0, rows - r), (0, cols - c)))


# ----------------------------------------------------------------------------
# Prep kernel: L2-row-normalize (f32 math) -> cast bf16 -> transpose to (K, N).
# One HBM read of the f32 weight, one HBM write of the bf16 transposed weight.
# ----------------------------------------------------------------------------
def _normalize_transpose_kernel(w_ref, o_ref):
    w = w_ref[...].astype(jnp.float32)                       # (TILE_R, K)
    # F.normalize(w, p=2, dim=1, eps=1e-12)  ==  w / max(||w||_2, eps)
    inv = lax.rsqrt(jnp.maximum(jnp.sum(w * w, axis=-1, keepdims=True), EPS * EPS))
    o_ref[...] = jnp.transpose(w * inv).astype(o_ref.dtype)  # (K, TILE_R) bf16


def normalize_transpose(w, *, out_dtype=jnp.bfloat16, tile_rows=512):
    """Row-normalize an nn.Linear weight (N, K) and emit it as (K, N) bf16."""
    R, K = w.shape   # caller pads R, K to (8,128)-friendly sizes
    while R % tile_rows != 0 and tile_rows > 128:
        tile_rows //= 2
    if R % tile_rows != 0:
        tile_rows = R
    return pl.pallas_call(
        _normalize_transpose_kernel,
        out_shape=jax.ShapeDtypeStruct((K, R), out_dtype),
        grid_spec=pltpu.PrefetchScalarGridSpec(
            num_scalar_prefetch=0,
            grid=(R // tile_rows,),
            in_specs=[pl.BlockSpec((tile_rows, K), lambda i: (i, 0))],
            out_specs=pl.BlockSpec((K, tile_rows), lambda i: (0, i)),
        ),
        compiler_params=pltpu.CompilerParams(
            dimension_semantics=("parallel",),
            vmem_limit_bytes=VMEM_LIMIT_BYTES,
        ),
    )(w)


def prepare_cosine_classifier_weights(w1, b1, w2, b2, *, tile_c=1024):
    """Normalize + transpose + pad the weights once. Cacheable across forwards
    when weights are static (inference) — this prep is the largest HBM pass."""
    H, Din = w1.shape
    C, H2 = w2.shape
    assert H == H2

    din_p = _round_up(Din, 128)
    h_p = _round_up(H, 128)
    tile_c = min(tile_c, _round_up(C, 128))
    c_p = _round_up(C, tile_c)

    w1_p = _pad2d(w1, h_p, din_p)
    w2_p = _pad2d(w2, c_p, h_p)
    b1_p = _pad2d(b1.reshape(1, H), 1, h_p)
    b2_p = _pad2d(b2.reshape(1, C), 1, c_p)

    w1t = normalize_transpose(w1_p)      # (din_p, h_p)  bf16
    w2t = normalize_transpose(w2_p)      # (h_p,  c_p)   bf16
    return dict(w1t=w1t, b1=b1_p, w2t=w2t, b2=b2_p,
                din=Din, h=H, c=C, tile_c=tile_c)


# ----------------------------------------------------------------------------
# Main kernel: x-normalize -> Linear1 -> ReLU  (once per batch tile, cached in
# VMEM scratch)  then  h @ W2^T tile + b2, scaled by 1/temp  (per C tile).
# Grid = (batch tiles [parallel], C tiles [arbitrary, innermost]).
# ----------------------------------------------------------------------------
def _cosine_head_kernel(x_ref, w1t_ref, b1_ref, w2t_ref, b2_ref, o_ref, h_ref,
                        *, inv_temp):
    c_idx = pl.program_id(1)

    @pl.when(c_idx == 0)
    def _():
        x = x_ref[...].astype(jnp.float32)
        inv = lax.rsqrt(
            jnp.maximum(jnp.sum(x * x, axis=-1, keepdims=True), EPS * EPS))
        xn = (x * inv).astype(jnp.bfloat16)
        # h = relu(xn @ W1n^T + b1); W1^T is pre-transposed to (Din, H).
        h = lax.dot_general(xn, w1t_ref[...], (((1,), (0,)), ((), ())),
                            preferred_element_type=jnp.float32)
        h = jnp.maximum(h + b1_ref[...], 0.0)
        h_ref[...] = h.astype(jnp.bfloat16)

    # out_tile = (h @ W2n^T[:, c_tile] + b2[c_tile]) / temp
    out = lax.dot_general(h_ref[...], w2t_ref[...], (((1,), (0,)), ((), ())),
                          preferred_element_type=jnp.float32)
    # Bias add + scale stay in f32 on the accumulator (v5e VPU has no bf16 path).
    o_ref[...] = ((out + b2_ref[...]) * inv_temp).astype(o_ref.dtype)


def cosine_classifier_apply(x, prepped, *, cls_dim, temp=0.05, tile_b=256):
    B, Din = x.shape
    assert Din == prepped["din"]
    C = prepped["c"]
    assert C == cls_dim[0] * cls_dim[1] * cls_dim[2]

    w1t, b1_p = prepped["w1t"], prepped["b1"]
    w2t, b2_p = prepped["w2t"], prepped["b2"]
    din_p, h_p = w1t.shape
    _, c_p = w2t.shape
    tile_c = prepped["tile_c"]

    # Larger batch tiles -> W2^T streamed fewer times (dominant HBM cost).
    tile_b = min(tile_b, _round_up(B, 16))
    b_p = _round_up(B, tile_b)
    x_p = _pad2d(x, b_p, din_p)

    kernel = functools.partial(_cosine_head_kernel, inv_temp=1.0 / temp)
    out = pl.pallas_call(
        kernel,
        out_shape=jax.ShapeDtypeStruct((b_p, c_p), x.dtype),
        grid_spec=pltpu.PrefetchScalarGridSpec(
            num_scalar_prefetch=0,
            grid=(b_p // tile_b, c_p // tile_c),              # C axis innermost
            in_specs=[
                pl.BlockSpec((tile_b, din_p), lambda i, j: (i, 0)),   # x tile
                # Resident W1^T: block index never changes -> single-buffer it
                # (reclaims ~8 MB at prod shapes; key for v7x's 64 MiB VMEM).
                pl.BlockSpec((din_p, h_p), lambda i, j: (0, 0),
                             pipeline_mode=pl.Buffered(buffer_count=1)),
                pl.BlockSpec((1, h_p), lambda i, j: (0, 0)),          # b1
                pl.BlockSpec((h_p, tile_c), lambda i, j: (0, j)),     # W2^T C-tile (streamed)
                pl.BlockSpec((1, tile_c), lambda i, j: (0, j)),       # b2 C-tile
            ],
            out_specs=pl.BlockSpec((tile_b, tile_c), lambda i, j: (i, j)),
            scratch_shapes=[pltpu.VMEM((tile_b, h_p), jnp.bfloat16)],  # cached h
        ),
        compiler_params=pltpu.CompilerParams(
            dimension_semantics=("parallel", "arbitrary"),
            vmem_limit_bytes=VMEM_LIMIT_BYTES,
        ),
    )(x_p, w1t, b1_p, w2t, b2_p)

    return out[:B, :C].reshape(-1, *cls_dim)


def cosine_classifier_forward(x, w1, b1, w2, b2, *, cls_dim, temp=0.05,
                              tile_b=256, tile_c=1024):
    """Convenience one-shot forward. For inference with static weights, call
    prepare_cosine_classifier_weights() once and reuse it via
    cosine_classifier_apply() to skip the per-call weight prep pass."""
    prepped = prepare_cosine_classifier_weights(w1, b1, w2, b2, tile_c=tile_c)
    return cosine_classifier_apply(x, prepped, cls_dim=cls_dim, temp=temp,
                                   tile_b=tile_b)


# ----------------------------------------------------------------------------
# Pure-JAX f32 reference for correctness checking.
# ----------------------------------------------------------------------------
def _ref_forward(x, w1, b1, w2, b2, cls_dim, temp):
    def rn(w):
        return w / jnp.maximum(jnp.linalg.norm(w, axis=1, keepdims=True), EPS)

    w1n, w2n = rn(w1), rn(w2)
    xn = x / jnp.maximum(jnp.linalg.norm(x, axis=1, keepdims=True), EPS)
    h = jnp.maximum(xn @ w1n.T + b1, 0.0)
    o = (h @ w2n.T + b2) / temp
    return o.reshape(-1, *cls_dim)


if __name__ == "__main__":
    # Small, module-consistent shapes (orig: Din=1800, H=2048, cls_dim=(101,56,2)).
    B, Din, H = 8, 256, 512
    cls_dim = (16, 4, 2)           # num_class = 128
    C = cls_dim[0] * cls_dim[1] * cls_dim[2]
    temp = 0.05

    key = jax.random.PRNGKey(0)
    kx, k1, k2, k3, k4 = jax.random.split(key, 5)
    x = jax.random.normal(kx, (B, Din), dtype=jnp.float32)
    w1 = jax.random.normal(k1, (H, Din), dtype=jnp.float32) * 0.05
    b1 = jax.random.normal(k2, (H,), dtype=jnp.float32) * 0.01
    w2 = jax.random.normal(k3, (C, H), dtype=jnp.float32) * 0.05
    b2 = jax.random.normal(k4, (C,), dtype=jnp.float32) * 0.01

    # Prep once (cacheable across forwards), then apply.
    prepped = prepare_cosine_classifier_weights(w1, b1, w2, b2)
    out = cosine_classifier_apply(x, prepped, cls_dim=cls_dim, temp=temp)
    out = jax.block_until_ready(out)

    ref = _ref_forward(x, w1, b1, w2, b2, cls_dim, temp)
    assert out.shape == (B,) + cls_dim, out.shape
    # bf16 weight/activation streaming -> looser tolerance vs the f32 reference.
    max_err = float(jnp.max(jnp.abs(out - ref)))
    assert jnp.allclose(out, ref, atol=5e-2, rtol=5e-2), max_err

    print("KERNEL_OK")
</pallas_src>

<mosaic_0001>
module attributes {stable_mosaic.version = 11 : i64} {
  func.func @_normalize_transpose_kernel(%arg0: i32, %arg1: memref<512x256xf32, #tpu.memory_space<vmem>>, %arg2: memref<256x512xbf16, #tpu.memory_space<vmem>>) attributes {dimension_semantics = [#tpu.dimension_semantics<parallel>], iteration_bounds = array<i64: 1>, scalar_prefetch = 0 : i64, scratch_operands = 0 : i64, tpu.core_type = #tpu.core_type<tc>, window_params = [{transform_indices = @transform_0, window_bounds = array<i64: 512, 256>}, {transform_indices = @transform_1, window_bounds = array<i64: 256, 512>}]} {
    %c0 = arith.constant 0 : index
    %c0_0 = arith.constant 0 : index
    %0 = vector.load %arg1[%c0, %c0_0] : memref<512x256xf32, #tpu.memory_space<vmem>>, vector<512x256xf32>
    %1 = arith.mulf %0, %0 : vector<512x256xf32>
    %cst = arith.constant dense<0.000000e+00> : vector<512xf32>
    %2 = vector.multi_reduction <add>, %1, %cst [1] : vector<512x256xf32> to vector<512xf32>
    %3 = vector.shape_cast %2 : vector<512xf32> to vector<512x1xf32>
    %cst_1 = arith.constant 1.000000e-24 : f32
    %4 = vector.broadcast %cst_1 : f32 to vector<512x1xf32>
    %5 = arith.maximumf %3, %4 : vector<512x1xf32>
    %6 = math.rsqrt %5 : vector<512x1xf32>
    %7 = vector.broadcast %6 : vector<512x1xf32> to vector<512x256xf32>
    %8 = arith.mulf %0, %7 : vector<512x256xf32>
    %9 = tpu.transpose %8, [1, 0] : vector<512x256xf32> -> vector<256x512xf32>
    %10 = arith.truncf %9 : vector<256x512xf32> to vector<256x512xbf16>
    %c0_2 = arith.constant 0 : index
    %c0_3 = arith.constant 0 : index
    %11 = vector.load %arg2[%c0_2, %c0_3] : memref<256x512xbf16, #tpu.memory_space<vmem>>, vector<256x512xbf16>
    tpu.vector_store %arg2[%c0_2, %c0_3], %10 {strides = array<i32>} : memref<256x512xbf16, #tpu.memory_space<vmem>>, vector<256x512xbf16>,
    return
  }
  func.func @transform_0(%arg0: i32) -> (i32, i32) {
    %c0_i32 = arith.constant 0 : i32
    %c0_i32_0 = arith.constant 0 : i32
    return %arg0, %c0_i32 : i32, i32
  }
  func.func @transform_1(%arg0: i32) -> (i32, i32) {
    %c0_i32 = arith.constant 0 : i32
    %c0_i32_0 = arith.constant 0 : i32
    return %c0_i32, %arg0 : i32, i32
  }
}

</mosaic_0001>

<llo_original>
// kernel: tpu_custom_call.1
$region0: #{tpu_custom_call.1}
  #allocation0 [shape = 'u32[]', space=smem, size = 0x4, offset = 0x4, fixed_abs, tag = 'smem constant byte address 0x4 - core index']
  #allocation1 [shape = 'u32[144,128]{1,0:T(1,128)}', space=vmem, size = 0x12000, scoped, tag = 'internal scratch']
  %s0 = inlined_call_operand.hbm [shape: f32[512,256], index: 0, kind: input, shape index: {}]
  %s1 = inlined_call_operand.hbm [shape: bf16[256,512], index: 1, kind: output, shape index: {}]
  %s2 = sld [smem:[#allocation0]]
  $region18: #{tpu_custom_call.1} parent=0
    _
  %s4 = ssub.s32 1, %s2
  %s5 = scalar_select 0, %s4, %s2
  $region1: #{tpu_custom_call.1} parent=0
    #allocation2 [shape = 'u8[524288]{0}', space=vmem, size = 0x80000, scoped, tag = 'input window, operand 0, single buffered']
    #allocation3 [shape = 's32[1]{0}', space=sflag, size = 0x4, scoped, tag = 'scoped memory for tpu_custom_call.1']
    #allocation4 [shape = 's32[1]{0}', space=sflag, size = 0x4, scoped, tag = 'scoped memory for tpu_custom_call.1']
    #allocation5 [shape = 'u8[262144]{0}', space=vmem, size = 0x40000, scoped, tag = 'output window, operand 0, single buffered']
    %6 = vsyncpa [#allocation3], 0
    %7 = vsyncpa [#allocation4], 0
    // Predicated region
    $region2: #{tpu_custom_call.1} parent=1 // pred_check
      _
    $region3: #{tpu_custom_call.1} parent=1 // pred_check_branch
      %9 = sbr.rel (0) target = $region5
    $region4: #{tpu_custom_call.1} parent=1 // pred_region
      %s11 = ssub.s32 16384, 16384
      %12 = vsyncadd [#allocation3], %s11
      %s13 = sshll.u32 [#allocation2], 4
      %s14 = int_to_ptr.vmem [resolvable:$true] %s13
      %19 = dma.hbm_to_vmem [thread:$0]  %s0, 16384, %s14, [#allocation3], 256, 256, 16
    $region5: #{tpu_custom_call.1} parent=1 // pred_fallthru
      _
    // Predicated region
    $region6: #{tpu_custom_call.1} parent=1 // pred_check
      _
    $region7: #{tpu_custom_call.1} parent=1 // pred_check_branch
      %21 = sbr.rel (0) target = $region9
    $region8: #{tpu_custom_call.1} parent=1 // pred_region
      %22 = dma.done [#allocation3], 16384
    $region9: #{tpu_custom_call.1} parent=1 // pred_fallthru
      _
    %v23 = vld [vmem:[#allocation2] sm:$0xff]
    %v24 = vld [vmem:[#allocation2 + $0x8] sm:$0xff]
    %v25 = vld [vmem:[#allocation2 + $0x10] sm:$0xff]
    %v26 = vld [vmem:[#allocation2 + $0x18] sm:$0xff]
    %v27 = vld [vmem:[#allocation2 + $0x20] sm:$0xff]
    %v28 = vld [vmem:[#allocation2 + $0x28] sm:$0xff]
    %v29 = vld [vmem:[#allocation2 + $0x30] sm:$0xff]
    %v30 = vld [vmem:[#allocation2 + $0x38] sm:$0xff]
    %v31 = vld [vmem:[#allocation2 + $0x40] sm:$0xff]
    %v32 = vld [vmem:[#allocation2 + $0x48] sm:$0xff]
    %v33 = vld [vmem:[#allocation2 + $0x50] sm:$0xff]
    %v34 = vld [vmem:[#allocation2 + $0x58] sm:$0xff]
    %v35 = vld [vmem:[#allocation2 + $0x60] sm:$0xff]
    %v36 = vld [vmem:[#allocation2 + $0x68] sm:$0xff]
    %v37 = vld [vmem:[#allocation2 + $0x70] sm:$0xff]
    %v38 = vld [vmem:[#allocation2 + $0x78] sm:$0xff]
    %v39 = vld [vmem:[#allocation2 + $0x80] sm:$0xff]
    %v40 = vld [vmem:[#allocation2 + $0x88] sm:$0xff]
    %v41 = vld [vmem:[#allocation2 + $0x90] sm:$0xff]
    %v42 = vld [vmem:[#allocation2 + $0x98] sm:$0xff]
    %v43 = vld [vmem:[#allocation2 + $0xa0] sm:$0xff]
    %v44 = vld [vmem:[#allocation2 + $0xa8] sm:$0xff]
    %v45 = vld [vmem:[#allocation2 + $0xb0] sm:$0xff]
    %v46 = vld [vmem:[#allocation2 + $0xb8] sm:$0xff]
    %v47 = vld [vmem:[#allocation2 + $0xc0] sm:$0xff]
    %v48 = vld [vmem:[#allocation2 + $0xc8] sm:$0xff]
    %v49 = vld [vmem:[#allocation2 + $0xd0] sm:$0xff]
    %v50 = vld [vmem:[#allocation2 + $0xd8] sm:$0xff]
    %v51 = vld [vmem:[#allocation2 + $0xe0] sm:$0xff]
    %v52 = vld [vmem:[#allocation2 + $0xe8] sm:$0xff]
    %v53 = vld [vmem:[#allocation2 + $0xf0] sm:$0xff]
    %v54 = vld [vmem:[#allocation2 + $0xf8] sm:$0xff]
    %v55 = vld [vmem:[#allocation2 + $0x100] sm:$0xff]
    %v56 = vld [vmem:[#allocation2 + $0x108] sm:$0xff]
    %v57 = vld [vmem:[#allocation2 + $0x110] sm:$0xff]
    %v58 = vld [vmem:[#allocation2 + $0x118] sm:$0xff]
    %v59 = vld [vmem:[#allocation2 + $0x120] sm:$0xff]
    %v60 = vld [vmem:[#allocation2 + $0x128] sm:$0xff]
    %v61 = vld [vmem:[#allocation2 + $0x130] sm:$0xff]
    %v62 = vld [vmem:[#allocation2 + $0x138] sm:$0xff]
    %v63 = vld [vmem:[#allocation2 + $0x140] sm:$0xff]
    %v64 = vld [vmem:[#allocation2 + $0x148] sm:$0xff]
    %v65 = vld [vmem:[#allocation2 + $0x150] sm:$0xff]
    %v66 = vld [vmem:[#allocation2 + $0x158] sm:$0xff]
    %v67 = vld [vmem:[#allocation2 + $0x160] sm:$0xff]
    %v68 = vld [vmem:[#allocation2 + $0x168] sm:$0xff]
    %v69 = vld [vmem:[#allocation2 + $0x170] sm:$0xff]
    %v70 = vld [vmem:[#allocation2 + $0x178] sm:$0xff]
    %v71 = vld [vmem:[#allocation2 + $0x180] sm:$0xff]
    %v72 = vld [vmem:[#allocation2 + $0x188] sm:$0xff]
    %v73 = vld [vmem:[#allocation2 + $0x190] sm:$0xff]
    %v74 = vld [vmem:[#allocation2 + $0x198] sm:$0xff]
    %v75 = vld [vmem:[#allocation2 + $0x1a0] sm:$0xff]
    %v76 = vld [vmem:[#allocation2 + $0x1a8] sm:$0xff]
    %v77 = vld [vmem:[#allocation2 + $0x1b0] sm:$0xff]
    %v78 = vld [vmem:[#allocation2 + $0x1b8] sm:$0xff]
    %v79 = vld [vmem:[#allocation2 + $0x1c0] sm:$0xff]
    %v80 = vld [vmem:[#allocation2 + $0x1c8] sm:$0xff]
    %v81 = vld [vmem:[#allocation2 + $0x1d0] sm:$0xff]
    %v82 = vld [vmem:[#allocation2 + $0x1d8] sm:$0xff]
    %v83 = vld [vmem:[#allocation2 + $0x1e0] sm:$0xff]
    %v84 = vld [vmem:[#allocation2 + $0x1e8] sm:$0xff]
    %v85 = vld [vmem:[#allocation2 + $0x1f0] sm:$0xff]
    %v86 = vld [vmem:[#allocation2 + $0x1f8] sm:$0xff]
    %v87 = vld [vmem:[#allocation2 + $0x200] sm:$0xff]
    %v88 = vld [vmem:[#allocation2 + $0x208] sm:$0xff]
    %v89 = vld [vmem:[#allocation2 + $0x210] sm:$0xff]
    %v90 = vld [vmem:[#allocation2 + $0x218] sm:$0xff]
    %v91 = vld [vmem:[#allocation2 + $0x220] sm:$0xff]
    %v92 = vld [vmem:[#allocation2 + $0x228] sm:$0xff]
    %v93 = vld [vmem:[#allocation2 + $0x230] sm:$0xff]
    %v94 = vld [vmem:[#allocation2 + $0x238] sm:$0xff]
    %v95 = vld [vmem:[#allocation2 + $0x240] sm:$0xff]
    %v96 = vld [vmem:[#allocation2 + $0x248] sm:$0xff]
    %v97 = vld [vmem:[#allocation2 + $0x250] sm:$0xff]
    %v98 = vld [vmem:[#allocation2 + $0x258] sm:$0xff]
    %v99 = vld [vmem:[#allocation2 + $0x260] sm:$0xff]
    %v100 = vld [vmem:[#allocation2 + $0x268] sm:$0xff]
    %v101 = vld [vmem:[#allocation2 + $0x270] sm:$0xff]
    %v102 = vld [vmem:[#allocation2 + $0x278] sm:$0xff]
    %v103 = vld [vmem:[#allocation2 + $0x280] sm:$0xff]
    %v104 = vld [vmem:[#allocation2 + $0x288] sm:$0xff]
    %v105 = vld [vmem:[#allocation2 + $0x290] sm:$0xff]
    %v106 = vld [vmem:[#allocation2 + $0x298] sm:$0xff]
    %v107 = vld [vmem:[#allocation2 + $0x2a0] sm:$0xff]
    %v108 = vld [vmem:[#allocation2 + $0x2a8] sm:$0xff]
    %v109 = vld [vmem:[#allocation2 + $0x2b0] sm:$0xff]
    %v110 = vld [vmem:[#allocation2 + $0x2b8] sm:$0xff]
    %v111 = vld [vmem:[#allocation2 + $0x2c0] sm:$0xff]
    %v112 = vld [vmem:[#allocation2 + $0x2c8] sm:$0xff]
    %v113 = vld [vmem:[#allocation2 + $0x2d0] sm:$0xff]
    %v114 = vld [vmem:[#allocation2 + $0x2d8] sm:$0xff]
    %v115 = vld [vmem:[#allocation2 + $0x2e0] sm:$0xff]
    %v116 = vld [vmem:[#allocation2 + $0x2e8] sm:$0xff]
    %v117 = vld [vmem:[#allocation2 + $0x2f0] sm:$0xff]
    %v118 = vld [vmem:[#allocation2 + $0x2f8] sm:$0xff]
    %v119 = vld [vmem:[#allocation2 + $0x300] sm:$0xff]
    %v120 = vld [vmem:[#allocation2 + $0x308] sm:$0xff]
    %v121 = vld [vmem:[#allocation2 + $0x310] sm:$0xff]
    %v122 = vld [vmem:[#allocation2 + $0x318] sm:$0xff]
    %v123 = vld [vmem:[#allocation2 + $0x320] sm:$0xff]
    %v124 = vld [vmem:[#allocation2 + $0x328] sm:$0xff]
    %v125 = vld [vmem:[#allocation2 + $0x330] sm:$0xff]
    %v126 = vld [vmem:[#allocation2 + $0x338] sm:$0xff]
    %v127 = vld [vmem:[#allocation2 + $0x340] sm:$0xff]
    %v128 = vld [vmem:[#allocation2 + $0x348] sm:$0xff]
    %v129 = vld [vmem:[#allocation2 + $0x350] sm:$0xff]
    %v130 = vld [vmem:[#allocation2 + $0x358] sm:$0xff]
    %v131 = vld [vmem:[#allocation2 + $0x360] sm:$0xff]
    %v132 = vld [vmem:[#allocation2 + $0x368] sm:$0xff]
    %v133 = vld [vmem:[#allocation2 + $0x370] sm:$0xff]
    %v134 = vld [vmem:[#allocation2 + $0x378] sm:$0xff]
    %v135 = vld [vmem:[#allocation2 + $0x380] sm:$0xff]
    %v136 = vld [vmem:[#allocation2 + $0x388] sm:$0xff]
    %v137 = vld [vmem:[#allocation2 + $0x390] sm:$0xff]
    %v138 = vld [vmem:[#allocation2 + $0x398] sm:$0xff]
    %v139 = vld [vmem:[#allocation2 + $0x3a0] sm:$0xff]
    %v140 = vld [vmem:[#allocation2 + $0x3a8] sm:$0xff]
    %v141 = vld [vmem:[#allocation2 + $0x3b0] sm:$0xff]
    %v142 = vld [vmem:[#allocation2 + $0x3b8] sm:$0xff]
    %v143 = vld [vmem:[#allocation2 + $0x3c0] sm:$0xff]
    %v144 = vld [vmem:[#allocation2 + $0x3c8] sm:$0xff]
    %v145 = vld [vmem:[#allocation2 + $0x3d0] sm:$0xff]
    %v146 = vld [vmem:[#allocation2 + $0x3d8] sm:$0xff]
    %v147 = vld [vmem:[#allocation2 + $0x3e0] sm:$0xff]
    %v148 = vld [vmem:[#allocation2 + $0x3e8] sm:$0xff]
    %v149 = vld [vmem:[#allocation2 + $0x3f0] sm:$0xff]
    %v150 = vld [vmem:[#allocation2 + $0x3f8] sm:$0xff]
    %v151 = vmul.f32 %v23, %v23
    %v152 = vmul.f32 %v24, %v24
    %v153 = vmul.f32 %v25, %v25
    %v154 = vmul.f32 %v26, %v26
    %v155 = vmul.f32 %v27, %v27
    %v156 = vmul.f32 %v28, %v28
    %v157 = vmul.f32 %v29, %v29
    %v158 = vmul.f32 %v30, %v30
    %v159 = vmul.f32 %v31, %v31
    %v160 = vmul.f32 %v32, %v32
    %v161 = vmul.f32 %v33, %v33
    %v162 = vmul.f32 %v34, %v34
    %v163 = vmul.f32 %v35, %v35
    %v164 = vmul.f32 %v36, %v36
    %v165 = vmul.f32 %v37, %v37
    %v166 = vmul.f32 %v38, %v38
    %v167 = vmul.f32 %v39, %v39
    %v168 = vmul.f32 %v40, %v40
    %v169 = vmul.f32 %v41, %v41
    %v170 = vmul.f32 %v42, %v42
    %v171 = vmul.f32 %v43, %v43
    %v172 = vmul.f32 %v44, %v44
    %v173 = vmul.f32 %v45, %v45
    %v174 = vmul.f32 %v46, %v46
    %v175 = vmul.f32 %v47, %v47
    %v176 = vmul.f32 %v48, %v48
    %v177 = vmul.f32 %v49, %v49
    %v178 = vmul.f32 %v50, %v50
    %v179 = vmul.f32 %v51, %v51
    %v180 = vmul.f32 %v52, %v52
    %v181 = vmul.f32 %v53, %v53
    %v182 = vmul.f32 %v54, %v54
    %v183 = vmul.f32 %v55, %v55
    %v184 = vmul.f32 %v56, %v56
    %v185 = vmul.f32 %v57, %v57
    %v186 = vmul.f32 %v58, %v58
    %v187 = vmul.f32 %v59, %v59
    %v188 = vmul.f32 %v60, %v60
    %v189 = vmul.f32 %v61, %v61
    %v190 = vmul.f32 %v62, %v62
    %v191 = vmul.f32 %v63, %v63
    %v192 = vmul.f32 %v64, %v64
    %v193 = vmul.f32 %v65, %v65
    %v194 = vmul.f32 %v66, %v66
    %v195 = vmul.f32 %v67, %v67
    %v196 = vmul.f32 %v68, %v68
    %v197 = vmul.f32 %v69, %v69
    %v198 = vmul.f32 %v70, %v70
    %v199 = vmul.f32 %v71, %v71
    %v200 = vmul.f32 %v72, %v72
    %v201 = vmul.f32 %v73, %v73
    %v202 = vmul.f32 %v74, %v74
    %v203 = vmul.f32 %v75, %v75
    %v204 = vmul.f32 %v76, %v76
    %v205 = vmul.f32 %v77, %v77
    %v206 = vmul.f32 %v78, %v78
    %v207 = vmul.f32 %v79, %v79
    %v208 = vmul.f32 %v80, %v80
    %v209 = vmul.f32 %v81, %v81
    %v210 = vmul.f32 %v82, %v82
    %v211 = vmul.f32 %v83, %v83
    %v212 = vmul.f32 %v84, %v84
    %v213 = vmul.f32 %v85, %v85
    %v214 = vmul.f32 %v86, %v86
    %v215 = vmul.f32 %v87, %v87
    %v216 = vmul.f32 %v88, %v88
    %v217 = vmul.f32 %v89, %v89
    %v218 = vmul.f32 %v90, %v90
    %v219 = vmul.f32 %v91, %v91
    %v220 = vmul.f32 %v92, %v92
    %v221 = vmul.f32 %v93, %v93
    %v222 = vmul.f32 %v94, %v94
    %v223 = vmul.f32 %v95, %v95
    %v224 = vmul.f32 %v96, %v96
    %v225 = vmul.f32 %v97, %v97
    %v226 = vmul.f32 %v98, %v98
    %v227 = vmul.f32 %v99, %v99
    %v228 = vmul.f32 %v100, %v100
    %v229 = vmul.f32 %v101, %v101
    %v230 = vmul.f32 %v102, %v102
    %v231 = vmul.f32 %v103, %v103
    %v232 = vmul.f32 %v104, %v104
    %v233 = vmul.f32 %v105, %v105
    %v234 = vmul.f32 %v106, %v106
    %v235 = vmul.f32 %v107, %v107
    %v236 = vmul.f32 %v108, %v108
    %v237 = vmul.f32 %v109, %v109
    %v238 = vmul.f32 %v110, %v110
    %v239 = vmul.f32 %v111, %v111
    %v240 = vmul.f32 %v112, %v112
    %v241 = vmul.f32 %v113, %v113
    %v242 = vmul.f32 %v114, %v114
    %v243 = vmul.f32 %v115, %v115
    %v244 = vmul.f32 %v116, %v116
    %v245 = vmul.f32 %v117, %v117
    %v246 = vmul.f32 %v118, %v118
    %v247 = vmul.f32 %v119, %v119
    %v248 = vmul.f32 %v120, %v120
    %v249 = vmul.f32 %v121, %v121
    %v250 = vmul.f32 %v122, %v122
    %v251 = vmul.f32 %v123, %v123
    %v252 = vmul.f32 %v124, %v124
    %v253 = vmul.f32 %v125, %v125
    %v254 = vmul.f32 %v126, %v126
    %v255 = vmul.f32 %v127, %v127
    %v256 = vmul.f32 %v128, %v128
    %v257 = vmul.f32 %v129, %v129
    %v258 = vmul.f32 %v130, %v130
    %v259 = vmul.f32 %v131, %v131
    %v260 = vmul.f32 %v132, %v132
    %v261 = vmul.f32 %v133, %v133
    %v262 = vmul.f32 %v134, %v134
    %v263 = vmul.f32 %v135, %v135
    %v264 = vmul.f32 %v136, %v136
    %v265 = vmul.f32 %v137, %v137
    %v266 = vmul.f32 %v138, %v138
    %v267 = vmul.f32 %v139, %v139
    %v268 = vmul.f32 %v140, %v140
    %v269 = vmul.f32 %v141, %v141
    %v270 = vmul.f32 %v142, %v142
    %v271 = vmul.f32 %v143, %v143
    %v272 = vmul.f32 %v144, %v144
    %v273 = vmul.f32 %v145, %v145
    %v274 = vmul.f32 %v146, %v146
    %v275 = vmul.f32 %v147, %v147
    %v276 = vmul.f32 %v148, %v148
    %v277 = vmul.f32 %v149, %v149
    %v278 = vmul.f32 %v150, %v150
    %v279 = vadd.f32 %v151, %v152
    %280 = vadd.xlane.f32.xlu0 %v279
    %v281 = vpop.xlane.xlu0 %280
    %v282 = vadd.f32 %v153, %v154
    %283 = vadd.xlane.f32.xlu0 %v282
    %v284 = vpop.xlane.xlu0 %283
    %v285 = vadd.f32 %v155, %v156
    %286 = vadd.xlane.f32.xlu0 %v285
    %v287 = vpop.xlane.xlu0 %286
    %v288 = vadd.f32 %v157, %v158
    %289 = vadd.xlane.f32.xlu0 %v288
    %v290 = vpop.xlane.xlu0 %289
    %v291 = vadd.f32 %v159, %v160
    %292 = vadd.xlane.f32.xlu0 %v291
    %v293 = vpop.xlane.xlu0 %292
    %v294 = vadd.f32 %v161, %v162
    %295 = vadd.xlane.f32.xlu0 %v294
    %v296 = vpop.xlane.xlu0 %295
    %v297 = vadd.f32 %v163, %v164
    %298 = vadd.xlane.f32.xlu0 %v297
    %v299 = vpop.xlane.xlu0 %298
    %v300 = vadd.f32 %v165, %v166
    %301 = vadd.xlane.f32.xlu0 %v300
    %v302 = vpop.xlane.xlu0 %301
    %v303 = vadd.f32 %v167, %v168
    %304 = vadd.xlane.f32.xlu0 %v303
    %v305 = vpop.xlane.xlu0 %304
    %v306 = vadd.f32 %v169, %v170
    %307 = vadd.xlane.f32.xlu0 %v306
    %v308 = vpop.xlane.xlu0 %307
    %v309 = vadd.f32 %v171, %v172
    %310 = vadd.xlane.f32.xlu0 %v309
    %v311 = vpop.xlane.xlu0 %310
    %v312 = vadd.f32 %v173, %v174
    %313 = vadd.xlane.f32.xlu0 %v312
    %v314 = vpop.xlane.xlu0 %313
    %v315 = vadd.f32 %v175, %v176
    %316 = vadd.xlane.f32.xlu0 %v315
    %v317 = vpop.xlane.xlu0 %316
    %v318 = vadd.f32 %v177, %v178
    %319 = vadd.xlane.f32.xlu0 %v318
    %v320 = vpop.xlane.xlu0 %319
    %v321 = vadd.f32 %v179, %v180
    %322 = vadd.xlane.f32.xlu0 %v321
    %v323 = vpop.xlane.xlu0 %322
    %v324 = vadd.f32 %v181, %v182
    %325 = vadd.xlane.f32.xlu0 %v324
    %v326 = vpop.xlane.xlu0 %325
    %v327 = vadd.f32 %v183, %v184
    %328 = vadd.xlane.f32.xlu0 %v327
    %v329 = vpop.xlane.xlu0 %328
    %v330 = vadd.f32 %v185, %v186
    %331 = vadd.xlane.f32.xlu0 %v330
    %v332 = vpop.xlane.xlu0 %331
    %v333 = vadd.f32 %v187, %v188
    %334 = vadd.xlane.f32.xlu0 %v333
    %v335 = vpop.xlane.xlu0 %334
    %v336 = vadd.f32 %v189, %v190
    %337 = vadd.xlane.f32.xlu0 %v336
    %v338 = vpop.xlane.xlu0 %337
    %v339 = vadd.f32 %v191, %v192
    %340 = vadd.xlane.f32.xlu0 %v339
    %v341 = vpop.xlane.xlu0 %340
    %v342 = vadd.f32 %v193, %v194
    %343 = vadd.xlane.f32.xlu0 %v342
    %v344 = vpop.xlane.xlu0 %343
    %v345 = vadd.f32 %v195, %v196
    %346 = vadd.xlane.f32.xlu0 %v345
    %v347 = vpop.xlane.xlu0 %346
    %v348 = vadd.f32 %v197, %v198
    %349 = vadd.xlane.f32.xlu0 %v348
    %v350 = vpop.xlane.xlu0 %349
    %v351 = vadd.f32 %v199, %v200
    %352 = vadd.xlane.f32.xlu0 %v351
    %v353 = vpop.xlane.xlu0 %352
    %v354 = vadd.f32 %v201, %v202
    %355 = vadd.xlane.f32.xlu0 %v354
    %v356 = vpop.xlane.xlu0 %355
    %v357 = vadd.f32 %v203, %v204
    %358 = vadd.xlane.f32.xlu0 %v357
    %v359 = vpop.xlane.xlu0 %358
    %v360 = vadd.f32 %v205, %v206
    %361 = vadd.xlane.f32.xlu0 %v360
    %v362 = vpop.xlane.xlu0 %361
    %v363 = vadd.f32 %v207, %v208
    %364 = vadd.xlane.f32.xlu0 %v363
    %v365 = vpop.xlane.xlu0 %364
    %v366 = vadd.f32 %v209, %v210
    %367 = vadd.xlane.f32.xlu0 %v366
    %v368 = vpop.xlane.xlu0 %367
    %v369 = vadd.f32 %v211, %v212
    %370 = vadd.xlane.f32.xlu0 %v369
    %v371 = vpop.xlane.xlu0 %370
    %v372 = vadd.f32 %v213, %v214
    %373 = vadd.xlane.f32.xlu0 %v372
    %v374 = vpop.xlane.xlu0 %373
    %v375 = vadd.f32 %v215, %v216
    %376 = vadd.xlane.f32.xlu0 %v375
    %v377 = vpop.xlane.xlu0 %376
    %v378 = vadd.f32 %v217, %v218
    %379 = vadd.xlane.f32.xlu0 %v378
    %v380 = vpop.xlane.xlu0 %379
    %v381 = vadd.f32 %v219, %v220
    %382 = vadd.xlane.f32.xlu0 %v381
    %v383 = vpop.xlane.xlu0 %382
    %v384 = vadd.f32 %v221, %v222
    %385 = vadd.xlane.f32.xlu0 %v384
    %v386 = vpop.xlane.xlu0 %385
    %v387 = vadd.f32 %v223, %v224
    %388 = vadd.xlane.f32.xlu0 %v387
    %v389 = vpop.xlane.xlu0 %388
    %v390 = vadd.f32 %v225, %v226
    %391 = vadd.xlane.f32.xlu0 %v390
    %v392 = vpop.xlane.xlu0 %391
    %v393 = vadd.f32 %v227, %v228
    %394 = vadd.xlane.f32.xlu0 %v393
    %v395 = vpop.xlane.xlu0 %394
    %v396 = vadd.f32 %v229, %v230
    %397 = vadd.xlane.f32.xlu0 %v396
    %v398 = vpop.xlane.xlu0 %397
    %v399 = vadd.f32 %v231, %v232
    %400 = vadd.xlane.f32.xlu0 %v399
    %v401 = vpop.xlane.xlu0 %400
    %v402 = vadd.f32 %v233, %v234
    %403 = vadd.xlane.f32.xlu0 %v402
    %v404 = vpop.xlane.xlu0 %403
    %v405 = vadd.f32 %v235, %v236
    %406 = vadd.xlane.f32.xlu0 %v405
    %v407 = vpop.xlane.xlu0 %406
    %v408 = vadd.f32 %v237, %v238
    %409 = vadd.xlane.f32.xlu0 %v408
    %v410 = vpop.xlane.xlu0 %409
    %v411 = vadd.f32 %v239, %v240
    %412 = vadd.xlane.f32.xlu0 %v411
    %v413 = vpop.xlane.xlu0 %412
    %v414 = vadd.f32 %v241, %v242
    %415 = vadd.xlane.f32.xlu0 %v414
    %v416 = vpop.xlane.xlu0 %415
    %v417 = vadd.f32 %v243, %v244
    %418 = vadd.xlane.f32.xlu0 %v417
    %v419 = vpop.xlane.xlu0 %418
    %v420 = vadd.f32 %v245, %v246
    %421 = vadd.xlane.f32.xlu0 %v420
    %v422 = vpop.xlane.xlu0 %421
    %v423 = vadd.f32 %v247, %v248
    %424 = vadd.xlane.f32.xlu0 %v423
    %v425 = vpop.xlane.xlu0 %424
    %v426 = vadd.f32 %v249, %v250
    %427 = vadd.xlane.f32.xlu0 %v426
    %v428 = vpop.xlane.xlu0 %427
    %v429 = vadd.f32 %v251, %v252
    %430 = vadd.xlane.f32.xlu0 %v429
    %v431 = vpop.xlane.xlu0 %430
    %v432 = vadd.f32 %v253, %v254
    %433 = vadd.xlane.f32.xlu0 %v432
    %v434 = vpop.xlane.xlu0 %433
    %v435 = vadd.f32 %v255, %v256
    %436 = vadd.xlane.f32.xlu0 %v435
    %v437 = vpop.xlane.xlu0 %436
    %v438 = vadd.f32 %v257, %v258
    %439 = vadd.xlane.f32.xlu0 %v438
    %v440 = vpop.xlane.xlu0 %439
    %v441 = vadd.f32 %v259, %v260
    %442 = vadd.xlane.f32.xlu0 %v441
    %v443 = vpop.xlane.xlu0 %442
    %v444 = vadd.f32 %v261, %v262
    %445 = vadd.xlane.f32.xlu0 %v444
    %v446 = vpop.xlane.xlu0 %445
    %v447 = vadd.f32 %v263, %v264
    %448 = vadd.xlane.f32.xlu0 %v447
    %v449 = vpop.xlane.xlu0 %448
    %v450 = vadd.f32 %v265, %v266
    %451 = vadd.xlane.f32.xlu0 %v450
    %v452 = vpop.xlane.xlu0 %451
    %v453 = vadd.f32 %v267, %v268
    %454 = vadd.xlane.f32.xlu0 %v453
    %v455 = vpop.xlane.xlu0 %454
    %v456 = vadd.f32 %v269, %v270
    %457 = vadd.xlane.f32.xlu0 %v456
    %v458 = vpop.xlane.xlu0 %457
    %v459 = vadd.f32 %v271, %v272
    %460 = vadd.xlane.f32.xlu0 %v459
    %v461 = vpop.xlane.xlu0 %460
    %v462 = vadd.f32 %v273, %v274
    %463 = vadd.xlane.f32.xlu0 %v462
    %v464 = vpop.xlane.xlu0 %463
    %v465 = vadd.f32 %v275, %v276
    %466 = vadd.xlane.f32.xlu0 %v465
    %v467 = vpop.xlane.xlu0 %466
    %v468 = vadd.f32 %v277, %v278
    %469 = vadd.xlane.f32.xlu0 %v468
    %v470 = vpop.xlane.xlu0 %469
    %v471 = vmax.f32 %v281, 1e-24
    %v472 = vmax.f32 %v284, 1e-24
    %v473 = vmax.f32 %v287, 1e-24
    %v474 = vmax.f32 %v290, 1e-24
    %v475 = vmax.f32 %v293, 1e-24
    %v476 = vmax.f32 %v296, 1e-24
    %v477 = vmax.f32 %v299, 1e-24
    %v478 = vmax.f32 %v302, 1e-24
    %v479 = vmax.f32 %v305, 1e-24
    %v480 = vmax.f32 %v308, 1e-24
    %v481 = vmax.f32 %v311, 1e-24
    %v482 = vmax.f32 %v314, 1e-24
    %v483 = vmax.f32 %v317, 1e-24
    %v484 = vmax.f32 %v320, 1e-24
    %v485 = vmax.f32 %v323, 1e-24
    %v486 = vmax.f32 %v326, 1e-24
    %v487 = vmax.f32 %v329, 1e-24
    %v488 = vmax.f32 %v332, 1e-24
    %v489 = vmax.f32 %v335, 1e-24
    %v490 = vmax.f32 %v338, 1e-24
    %v491 = vmax.f32 %v341, 1e-24
    %v492 = vmax.f32 %v344, 1e-24
    %v493 = vmax.f32 %v347, 1e-24
    %v494 = vmax.f32 %v350, 1e-24
    %v495 = vmax.f32 %v353, 1e-24
    %v496 = vmax.f32 %v356, 1e-24
    %v497 = vmax.f32 %v359, 1e-24
    %v498 = vmax.f32 %v362, 1e-24
    %v499 = vmax.f32 %v365, 1e-24
    %v500 = vmax.f32 %v368, 1e-24
    %v501 = vmax.f32 %v371, 1e-24
    %v502 = vmax.f32 %v374, 1e-24
    %v503 = vmax.f32 %v377, 1e-24
    %v504 = vmax.f32 %v380, 1e-24
    %v505 = vmax.f32 %v383, 1e-24
    %v506 = vmax.f32 %v386, 1e-24
    %v507 = vmax.f32 %v389, 1e-24
    %v508 = vmax.f32 %v392, 1e-24
    %v509 = vmax.f32 %v395, 1e-24
    %v510 = vmax.f32 %v398, 1e-24
    %v511 = vmax.f32 %v401, 1e-24
    %v512 = vmax.f32 %v404, 1e-24
    %v513 = vmax.f32 %v407, 1e-24
    %v514 = vmax.f32 %v410, 1e-24
    %v515 = vmax.f32 %v413, 1e-24
    %v516 = vmax.f32 %v416, 1e-24
    %v517 = vmax.f32 %v419, 1e-24
    %v518 = vmax.f32 %v422, 1e-24
    %v519 = vmax.f32 %v425, 1e-24
    %v520 = vmax.f32 %v428, 1e-24
    %v521 = vmax.f32 %v431, 1e-24
    %v522 = vmax.f32 %v434, 1e-24
    %v523 = vmax.f32 %v437, 1e-24
    %v524 = vmax.f32 %v440, 1e-24
    %v525 = vmax.f32 %v443, 1e-24
    %v526 = vmax.f32 %v446, 1e-24
    %v527 = vmax.f32 %v449, 1e-24
    %v528 = vmax.f32 %v452, 1e-24
    %v529 = vmax.f32 %v455, 1e-24
    %v530 = vmax.f32 %v458, 1e-24
    %v531 = vmax.f32 %v461, 1e-24
    %v532 = vmax.f32 %v464, 1e-24
    %v533 = vmax.f32 %v467, 1e-24
    %v534 = vmax.f32 %v470, 1e-24
    %v535 = vrsqrt.pop %v471
    %v536 = vrsqrt.pop %v472
    %v537 = vrsqrt.pop %v473
    %v538 = vrsqrt.pop %v474
    %v539 = vrsqrt.pop %v475
    %v540 = vrsqrt.pop %v476
    %v541 = vrsqrt.pop %v477
    %v542 = vrsqrt.pop %v478
    %v543 = vrsqrt.pop %v479
    %v544 = vrsqrt.pop %v480
    %v545 = vrsqrt.pop %v481
    %v546 = vrsqrt.pop %v482
    %v547 = vrsqrt.pop %v483
    %v548 = vrsqrt.pop %v484
    %v549 = vrsqrt.pop %v485
    %v550 = vrsqrt.pop %v486
    %v551 = vrsqrt.pop %v487
    %v552 = vrsqrt.pop %v488
    %v553 = vrsqrt.pop %v489
    %v554 = vrsqrt.pop %v490
    %v555 = vrsqrt.pop %v491
    %v556 = vrsqrt.pop %v492
    %v557 = vrsqrt.pop %v493
    %v558 = vrsqrt.pop %v494
    %v559 = vrsqrt.pop %v495
    %v560 = vrsqrt.pop %v496
    %v561 = vrsqrt.pop %v497
    %v562 = vrsqrt.pop %v498
    %v563 = vrsqrt.pop %v499
    %v564 = vrsqrt.pop %v500
    %v565 = vrsqrt.pop %v501
    %v566 = vrsqrt.pop %v502
    %v567 = vrsqrt.pop %v503
    %v568 = vrsqrt.pop %v504
    %v569 = vrsqrt.pop %v505
    %v570 = vrsqrt.pop %v506
    %v571 = vrsqrt.pop %v507
    %v572 = vrsqrt.pop %v508
    %v573 = vrsqrt.pop %v509
    %v574 = vrsqrt.pop %v510
    %v575 = vrsqrt.pop %v511
    %v576 = vrsqrt.pop %v512
    %v577 = vrsqrt.pop %v513
    %v578 = vrsqrt.pop %v514
    %v579 = vrsqrt.pop %v515
    %v580 = vrsqrt.pop %v516
    %v581 = vrsqrt.pop %v517
    %v582 = vrsqrt.pop %v518
    %v583 = vrsqrt.pop %v519
    %v584 = vrsqrt.pop %v520
    %v585 = vrsqrt.pop %v521
    %v586 = vrsqrt.pop %v522
    %v587 = vrsqrt.pop %v523
    %v588 = vrsqrt.pop %v524
    %v589 = vrsqrt.pop %v525
    %v590 = vrsqrt.pop %v526
    %v591 = vrsqrt.pop %v527
    %v592 = vrsqrt.pop %v528
    %v593 = vrsqrt.pop %v529
    %v594 = vrsqrt.pop %v530
    %v595 = vrsqrt.pop %v531
    %v596 = vrsqrt.pop %v532
    %v597 = vrsqrt.pop %v533
    %v598 = vrsqrt.pop %v534
    %v599 = vmul.f32 %v23, %v535
    %v600 = vmul.f32 %v24, %v535
    %v601 = vmul.f32 %v25, %v536
    %v602 = vmul.f32 %v26, %v536
    %v603 = vmul.f32 %v27, %v537
    %v604 = vmul.f32 %v28, %v537
    %v605 = vmul.f32 %v29, %v538
    %v606 = vmul.f32 %v30, %v538
    %v607 = vmul.f32 %v31, %v539
    %v608 = vmul.f32 %v32, %v539
    %v609 = vmul.f32 %v33, %v540
    %v610 = vmul.f32 %v34, %v540
    %v611 = vmul.f32 %v35, %v541
    %v612 = vmul.f32 %v36, %v541
    %v613 = vmul.f32 %v37, %v542
    %v614 = vmul.f32 %v38, %v542
    %v615 = vmul.f32 %v39, %v543
    %v616 = vmul.f32 %v40, %v543
    %v617 = vmul.f32 %v41, %v544
    %v618 = vmul.f32 %v42, %v544
    %v619 = vmul.f32 %v43, %v545
    %v620 = vmul.f32 %v44, %v545
    %v621 = vmul.f32 %v45, %v546
    %v622 = vmul.f32 %v46, %v546
    %v623 = vmul.f32 %v47, %v547
    %v624 = vmul.f32 %v48, %v547
    %v625 = vmul.f32 %v49, %v548
    %v626 = vmul.f32 %v50, %v548
    %v627 = vmul.f32 %v51, %v549
    %v628 = vmul.f32 %v52, %v549
    %v629 = vmul.f32 %v53, %v550
    %v630 = vmul.f32 %v54, %v550
    %v631 = vmul.f32 %v55, %v551
    %v632 = vmul.f32 %v56, %v551
    %v633 = vmul.f32 %v57, %v552
    %v634 = vmul.f32 %v58, %v552
    %v635 = vmul.f32 %v59, %v553
    %v636 = vmul.f32 %v60, %v553
    %v637 = vmul.f32 %v61, %v554
    %v638 = vmul.f32 %v62, %v554
    %v639 = vmul.f32 %v63, %v555
    %v640 = vmul.f32 %v64, %v555
    %v641 = vmul.f32 %v65, %v556
    %v642 = vmul.f32 %v66, %v556
    %v643 = vmul.f32 %v67, %v557
    %v644 = vmul.f32 %v68, %v557
    %v645 = vmul.f32 %v69, %v558
    %v646 = vmul.f32 %v70, %v558
    %v647 = vmul.f32 %v71, %v559
    %v648 = vmul.f32 %v72, %v559
    %v649 = vmul.f32 %v73, %v560
    %v650 = vmul.f32 %v74, %v560
    %v651 = vmul.f32 %v75, %v561
    %v652 = vmul.f32 %v76, %v561
    %v653 = vmul.f32 %v77, %v562
    %v654 = vmul.f32 %v78, %v562
    %v655 = vmul.f32 %v79, %v563
    %v656 = vmul.f32 %v80, %v563
    %v657 = vmul.f32 %v81, %v564
    %v658 = vmul.f32 %v82, %v564
    %v659 = vmul.f32 %v83, %v565
    %v660 = vmul.f32 %v84, %v565
    %v661 = vmul.f32 %v85, %v566
    %v662 = vmul.f32 %v86, %v566
    %v663 = vmul.f32 %v87, %v567
    %v664 = vmul.f32 %v88, %v567
    %v665 = vmul.f32 %v89, %v568
    %v666 = vmul.f32 %v90, %v568
    %v667 = vmul.f32 %v91, %v569
    %v668 = vmul.f32 %v92, %v569
    %v669 = vmul.f32 %v93, %v570
    %v670 = vmul.f32 %v94, %v570
    %v671 = vmul.f32 %v95, %v571
    %v672 = vmul.f32 %v96, %v571
    %v673 = vmul.f32 %v97, %v572
    %v674 = vmul.f32 %v98, %v572
    %v675 = vmul.f32 %v99, %v573
    %v676 = vmul.f32 %v100, %v573
    %v677 = vmul.f32 %v101, %v574
    %v678 = vmul.f32 %v102, %v574
    %v679 = vmul.f32 %v103, %v575
    %v680 = vmul.f32 %v104, %v575
    %v681 = vmul.f32 %v105, %v576
    %v682 = vmul.f32 %v106, %v576
    %v683 = vmul.f32 %v107, %v577
    %v684 = vmul.f32 %v108, %v577
    %v685 = vmul.f32 %v109, %v578
    %v686 = vmul.f32 %v110, %v578
    %v687 = vmul.f32 %v111, %v579
    %v688 = vmul.f32 %v112, %v579
    %v689 = vmul.f32 %v113, %v580
    %v690 = vmul.f32 %v114, %v580
    %v691 = vmul.f32 %v115, %v581
    %v692 = vmul.f32 %v116, %v581
    %v693 = vmul.f32 %v117, %v582
    %v694 = vmul.f32 %v118, %v582
    %v695 = vmul.f32 %v119, %v583
    %v696 = vmul.f32 %v120, %v583
    %v697 = vmul.f32 %v121, %v584
    %v698 = vmul.f32 %v122, %v584
    %v699 = vmul.f32 %v123, %v585
    %v700 = vmul.f32 %v124, %v585
    %v701 = vmul.f32 %v125, %v586
    %v702 = vmul.f32 %v126, %v586
    %v703 = vmul.f32 %v127, %v587
    %v704 = vmul.f32 %v128, %v587
    %v705 = vmul.f32 %v129, %v588
    %v706 = vmul.f32 %v130, %v588
    %v707 = vmul.f32 %v131, %v589
    %v708 = vmul.f32 %v132, %v589
    %v709 = vmul.f32 %v133, %v590
    %v710 = vmul.f32 %v134, %v590
    %v711 = vmul.f32 %v135, %v591
    %v712 = vmul.f32 %v136, %v591
    %v713 = vmul.f32 %v137, %v592
    %v714 = vmul.f32 %v138, %v592
    %v715 = vmul.f32 %v139, %v593
    %v716 = vmul.f32 %v140, %v593
    %v717 = vmul.f32 %v141, %v594
    %v718 = vmul.f32 %v142, %v594
    %v719 = vmul.f32 %v143, %v595
    %v720 = vmul.f32 %v144, %v595
    %v721 = vmul.f32 %v145, %v596
    %v722 = vmul.f32 %v146, %v596
    %v723 = vmul.f32 %v147, %v597
    %v724 = vmul.f32 %v148, %v597
    %v725 = vmul.f32 %v149, %v598
    %v726 = vmul.f32 %v150, %v598
    %727 = vxpose.xlu0.b32.start [1/16] %v599, 128
    %728 = vxpose.xlu0.b32.cont [2/16] %v601, 128
    %729 = vxpose.xlu0.b32.cont [3/16] %v603, 128
    %730 = vxpose.xlu0.b32.cont [4/16] %v605, 128
    %731 = vxpose.xlu0.b32.cont [5/16] %v607, 128
    %732 = vxpose.xlu0.b32.cont [6/16] %v609, 128
    %733 = vxpose.xlu0.b32.cont [7/16] %v611, 128
    %734 = vxpose.xlu0.b32.cont [8/16] %v613, 128
    %735 = vxpose.xlu0.b32.cont [9/16] %v615, 128
    %736 = vxpose.xlu0.b32.cont [10/16] %v617, 128
    %737 = vxpose.xlu0.b32.cont [11/16] %v619, 128
    %738 = vxpose.xlu0.b32.cont [12/16] %v621, 128
    %739 = vxpose.xlu0.b32.cont [13/16] %v623, 128
    %740 = vxpose.xlu0.b32.cont [14/16] %v625, 128
    %741 = vxpose.xlu0.b32.cont [15/16] %v627, 128
    %742 = vxpose.xlu0.b32.end [16/16] %v629, 128
    %v743 = vpop.trf.xlu0
    %v744 = vpop.trf.xlu0
    %v745 = vpop.trf.xlu0
    %v746 = vpop.trf.xlu0
    %v747 = vpop.trf.xlu0
    %v748 = vpop.trf.xlu0
    %v749 = vpop.trf.xlu0
    %v750 = vpop.trf.xlu0
    %v751 = vpop.trf.xlu0
    %v752 = vpop.trf.xlu0
    %v753 = vpop.trf.xlu0
    %v754 = vpop.trf.xlu0
    %v755 = vpop.trf.xlu0
    %v756 = vpop.trf.xlu0
    %v757 = vpop.trf.xlu0
    %v758 = vpop.trf.xlu0
    %759 = vxpose.xlu0.b32.start [1/16] %v600, 128
    %760 = vxpose.xlu0.b32.cont [2/16] %v602, 128
    %761 = vxpose.xlu0.b32.cont [3/16] %v604, 128
    %762 = vxpose.xlu0.b32.cont [4/16] %v606, 128
    %763 = vxpose.xlu0.b32.cont [5/16] %v608, 128
    %764 = vxpose.xlu0.b32.cont [6/16] %v610, 128
    %765 = vxpose.xlu0.b32.cont [7/16] %v612, 128
    %766 = vxpose.xlu0.b32.cont [8/16] %v614, 128
    %767 = vxpose.xlu0.b32.cont [9/16] %v616, 128
    %768 = vxpose.xlu0.b32.cont [10/16] %v618, 128
    %769 = vxpose.xlu0.b32.cont [11/16] %v620, 128
    %770 = vxpose.xlu0.b32.cont [12/16] %v622, 128
    %771 = vxpose.xlu0.b32.cont [13/16] %v624, 128
    %772 = vxpose.xlu0.b32.cont [14/16] %v626, 128
    %773 = vxpose.xlu0.b32.cont [15/16] %v628, 128
    %774 = vxpose.xlu0.b32.end [16/16] %v630, 128
    %v775 = vpop.trf.xlu0
    %v776 = vpop.trf.xlu0
    %v777 = vpop.trf.xlu0
    %v778 = vpop.trf.xlu0
    %v779 = vpop.trf.xlu0
    %v780 = vpop.trf.xlu0
    %v781 = vpop.trf.xlu0
    %v782 = vpop.trf.xlu0
    %v783 = vpop.trf.xlu0
    %v784 = vpop.trf.xlu0
    %v785 = vpop.trf.xlu0
    %v786 = vpop.trf.xlu0
    %v787 = vpop.trf.xlu0
    %v788 = vpop.trf.xlu0
    %v789 = vpop.trf.xlu0
    %v790 = vpop.trf.xlu0
    %791 = vxpose.xlu0.b32.start [1/16] %v631, 128
    %792 = vxpose.xlu0.b32.cont [2/16] %v633, 128
    %793 = vxpose.xlu0.b32.cont [3/16] %v635, 128
    %794 = vxpose.xlu0.b32.cont [4/16] %v637, 128
    %795 = vxpose.xlu0.b32.cont [5/16] %v639, 128
    %796 = vxpose.xlu0.b32.cont [6/16] %v641, 128
    %797 = vxpose.xlu0.b32.cont [7/16] %v643, 128
    %798 = vxpose.xlu0.b32.cont [8/16] %v645, 128
    %799 = vxpose.xlu0.b32.cont [9/16] %v647, 128
    %800 = vxpose.xlu0.b32.cont [10/16] %v649, 128
    %801 = vxpose.xlu0.b32.cont [11/16] %v651, 128
    %802 = vxpose.xlu0.b32.cont [12/16] %v653, 128
    %803 = vxpose.xlu0.b32.cont [13/16] %v655, 128
    %804 = vxpose.xlu0.b32.cont [14/16] %v657, 128
    %805 = vxpose.xlu0.b32.cont [15/16] %v659, 128
    %806 = vxpose.xlu0.b32.end [16/16] %v661, 128
    %v807 = vpop.trf.xlu0
    %v808 = vpop.trf.xlu0
    %v809 = vpop.trf.xlu0
    %v810 = vpop.trf.xlu0
    %v811 = vpop.trf.xlu0
    %v812 = vpop.trf.xlu0
    %v813 = vpop.trf.xlu0
    %v814 = vpop.trf.xlu0
    %v815 = vpop.trf.xlu0
    %v816 = vpop.trf.xlu0
    %v817 = vpop.trf.xlu0
    %v818 = vpop.trf.xlu0
    %v819 = vpop.trf.xlu0
    %v820 = vpop.trf.xlu0
    %v821 = vpop.trf.xlu0
    %v822 = vpop.trf.xlu0
    %823 = vxpose.xlu0.b32.start [1/16] %v632, 128
    %824 = vxpose.xlu0.b32.cont [2/16] %v634, 128
    %825 = vxpose.xlu0.b32.cont [3/16] %v636, 128
    %826 = vxpose.xlu0.b32.cont [4/16] %v638, 128
    %827 = vxpose.xlu0.b32.cont [5/16] %v640, 128
    %828 = vxpose.xlu0.b32.cont [6/16] %v642, 128
    %829 = vxpose.xlu0.b32.cont [7/16] %v644, 128
    %830 = vxpose.xlu0.b32.cont [8/16] %v646, 128
    %831 = vxpose.xlu0.b32.cont [9/16] %v648, 128
    %832 = vxpose.xlu0.b32.cont [10/16] %v650, 128
    %833 = vxpose.xlu0.b32.cont [11/16] %v652, 128
    %834 = vxpose.xlu0.b32.cont [12/16] %v654, 128
    %835 = vxpose.xlu0.b32.cont [13/16] %v656, 128
    %836 = vxpose.xlu0.b32.cont [14/16] %v658, 128
    %837 = vxpose.xlu0.b32.cont [15/16] %v660, 128
    %838 = vxpose.xlu0.b32.end [16/16] %v662, 128
    %v839 = vpop.trf.xlu0
    %v840 = vpop.trf.xlu0
    %v841 = vpop.trf.xlu0
    %v842 = vpop.trf.xlu0
    %v843 = vpop.trf.xlu0
    %v844 = vpop.trf.xlu0
    %v845 = vpop.trf.xlu0
    %v846 = vpop.trf.xlu0
    %v847 = vpop.trf.xlu0
    %v848 = vpop.trf.xlu0
    %v849 = vpop.trf.xlu0
    %v850 = vpop.trf.xlu0
    %v851 = vpop.trf.xlu0
    %v852 = vpop.trf.xlu0
    %v853 = vpop.trf.xlu0
    %v854 = vpop.trf.xlu0
    %855 = vxpose.xlu0.b32.start [1/16] %v663, 128
    %856 = vxpose.xlu0.b32.cont [2/16] %v665, 128
    %857 = vxpose.xlu0.b32.cont [3/16] %v667, 128
    %858 = vxpose.xlu0.b32.cont [4/16] %v669, 128
    %859 = vxpose.xlu0.b32.cont [5/16] %v671, 128
    %860 = vxpose.xlu0.b32.cont [6/16] %v673, 128
    %861 = vxpose.xlu0.b32.cont [7/16] %v675, 128
    %862 = vxpose.xlu0.b32.cont [8/16] %v677, 128
    %863 = vxpose.xlu0.b32.cont [9/16] %v679, 128
    %864 = vxpose.xlu0.b32.cont [10/16] %v681, 128
    %865 = vxpose.xlu0.b32.cont [11/16] %v683, 128
    %866 = vxpose.xlu0.b32.cont [12/16] %v685, 128
    %867 = vxpose.xlu0.b32.cont [13/16] %v687, 128
    %868 = vxpose.xlu0.b32.cont [14/16] %v689, 128
    %869 = vxpose.xlu0.b32.cont [15/16] %v691, 128
    %870 = vxpose.xlu0.b32.end [16/16] %v693, 128
    %v871 = vpop.trf.xlu0
    %v872 = vpop.trf.xlu0
    %v873 = vpop.trf.xlu0
    %v874 = vpop.trf.xlu0
    %v875 = vpop.trf.xlu0
    %v876 = vpop.trf.xlu0
    %v877 = vpop.trf.xlu0
    %v878 = vpop.trf.xlu0
    %v879 = vpop.trf.xlu0
    %v880 = vpop.trf.xlu0
    %v881 = vpop.trf.xlu0
    %v882 = vpop.trf.xlu0
    %v883 = vpop.trf.xlu0
    %v884 = vpop.trf.xlu0
    %v885 = vpop.trf.xlu0
    %v886 = vpop.trf.xlu0
    %887 = vxpose.xlu0.b32.start [1/16] %v664, 128
    %888 = vxpose.xlu0.b32.cont [2/16] %v666, 128
    %889 = vxpose.xlu0.b32.cont [3/16] %v668, 128
    %890 = vxpose.xlu0.b32.cont [4/16] %v670, 128
    %891 = vxpose.xlu0.b32.cont [5/16] %v672, 128
    %892 = vxpose.xlu0.b32.cont [6/16] %v674, 128
    %893 = vxpose.xlu0.b32.cont [7/16] %v676, 128
    %894 = vxpose.xlu0.b32.cont [8/16] %v678, 128
    %895 = vxpose.xlu0.b32.cont [9/16] %v680, 128
    %896 = vxpose.xlu0.b32.cont [10/16] %v682, 128
    %897 = vxpose.xlu0.b32.cont [11/16] %v684, 128
    %898 = vxpose.xlu0.b32.cont [12/16] %v686, 128
    %899 = vxpose.xlu0.b32.cont [13/16] %v688, 128
    %900 = vxpose.xlu0.b32.cont [14/16] %v690, 128
    %901 = vxpose.xlu0.b32.cont [15/16] %v692, 128
    %902 = vxpose.xlu0.b32.end [16/16] %v694, 128
    %v903 = vpop.trf.xlu0
    %v904 = vpop.trf.xlu0
    %v905 = vpop.trf.xlu0
    %v906 = vpop.trf.xlu0
    %v907 = vpop.trf.xlu0
    %v908 = vpop.trf.xlu0
    %v909 = vpop.trf.xlu0
    %v910 = vpop.trf.xlu0
    %v911 = vpop.trf.xlu0
    %v912 = vpop.trf.xlu0
    %v913 = vpop.trf.xlu0
    %v914 = vpop.trf.xlu0
    %v915 = vpop.trf.xlu0
    %v916 = vpop.trf.xlu0
    %v917 = vpop.trf.xlu0
    %v918 = vpop.trf.xlu0
    %919 = vxpose.xlu0.b32.start [1/16] %v695, 128
    %920 = vxpose.xlu0.b32.cont [2/16] %v697, 128
    %921 = vxpose.xlu0.b32.cont [3/16] %v699, 128
    %922 = vxpose.xlu0.b32.cont [4/16] %v701, 128
    %923 = vxpose.xlu0.b32.cont [5/16] %v703, 128
    %924 = vxpose.xlu0.b32.cont [6/16] %v705, 128
    %925 = vxpose.xlu0.b32.cont [7/16] %v707, 128
    %926 = vxpose.xlu0.b32.cont [8/16] %v709, 128
    %927 = vxpose.xlu0.b32.cont [9/16] %v711, 128
    %928 = vxpose.xlu0.b32.cont [10/16] %v713, 128
    %929 = vxpose.xlu0.b32.cont [11/16] %v715, 128
    %930 = vxpose.xlu0.b32.cont [12/16] %v717, 128
    %931 = vxpose.xlu0.b32.cont [13/16] %v719, 128
    %932 = vxpose.xlu0.b32.cont [14/16] %v721, 128
    %933 = vxpose.xlu0.b32.cont [15/16] %v723, 128
    %934 = vxpose.xlu0.b32.end [16/16] %v725, 128
    %v935 = vpop.trf.xlu0
    %v936 = vpop.trf.xlu0
    %v937 = vpop.trf.xlu0
    %v938 = vpop.trf.xlu0
    %v939 = vpop.trf.xlu0
    %v940 = vpop.trf.xlu0
    %v941 = vpop.trf.xlu0
    %v942 = vpop.trf.xlu0
    %v943 = vpop.trf.xlu0
    %v944 = vpop.trf.xlu0
    %v945 = vpop.trf.xlu0
    %v946 = vpop.trf.xlu0
    %v947 = vpop.trf.xlu0
    %v948 = vpop.trf.xlu0
    %v949 = vpop.trf.xlu0
    %v950 = vpop.trf.xlu0
    %951 = vxpose.xlu0.b32.start [1/16] %v696, 128
    %952 = vxpose.xlu0.b32.cont [2/16] %v698, 128
    %953 = vxpose.xlu0.b32.cont [3/16] %v700, 128
    %954 = vxpose.xlu0.b32.cont [4/16] %v702, 128
    %955 = vxpose.xlu0.b32.cont [5/16] %v704, 128
    %956 = vxpose.xlu0.b32.cont [6/16] %v706, 128
    %957 = vxpose.xlu0.b32.cont [7/16] %v708, 128
    %958 = vxpose.xlu0.b32.cont [8/16] %v710, 128
    %959 = vxpose.xlu0.b32.cont [9/16] %v712, 128
    %960 = vxpose.xlu0.b32.cont [10/16] %v714, 128
    %961 = vxpose.xlu0.b32.cont [11/16] %v716, 128
    %962 = vxpose.xlu0.b32.cont [12/16] %v718, 128
    %963 = vxpose.xlu0.b32.cont [13/16] %v720, 128
    %964 = vxpose.xlu0.b32.cont [14/16] %v722, 128
    %965 = vxpose.xlu0.b32.cont [15/16] %v724, 128
    %966 = vxpose.xlu0.b32.end [16/16] %v726, 128
    %v967 = vpop.trf.xlu0
    %v968 = vpop.trf.xlu0
    %v969 = vpop.trf.xlu0
    %v970 = vpop.trf.xlu0
    %v971 = vpop.trf.xlu0
    %v972 = vpop.trf.xlu0
    %v973 = vpop.trf.xlu0
    %v974 = vpop.trf.xlu0
    %v975 = vpop.trf.xlu0
    %v976 = vpop.trf.xlu0
    %v977 = vpop.trf.xlu0
    %v978 = vpop.trf.xlu0
    %v979 = vpop.trf.xlu0
    %v980 = vpop.trf.xlu0
    %v981 = vpop.trf.xlu0
    %v982 = vpop.trf.xlu0
    %v983 = vpack.c.bf16 %v744, %v743
    %v984 = vpack.c.bf16 %v808, %v807
    %v985 = vpack.c.bf16 %v872, %v871
    %v986 = vpack.c.bf16 %v936, %v935
    %v987 = vpack.c.bf16 %v746, %v745
    %v988 = vpack.c.bf16 %v810, %v809
    %v989 = vpack.c.bf16 %v874, %v873
    %v990 = vpack.c.bf16 %v938, %v937
    %v991 = vpack.c.bf16 %v748, %v747
    %v992 = vpack.c.bf16 %v812, %v811
    %v993 = vpack.c.bf16 %v876, %v875
    %v994 = vpack.c.bf16 %v940, %v939
    %v995 = vpack.c.bf16 %v750, %v749
    %v996 = vpack.c.bf16 %v814, %v813
    %v997 = vpack.c.bf16 %v878, %v877
    %v998 = vpack.c.bf16 %v942, %v941
    %v999 = vpack.c.bf16 %v752, %v751
    %v1000 = vpack.c.bf16 %v816, %v815
    %v1001 = vpack.c.bf16 %v880, %v879
    %v1002 = vpack.c.bf16 %v944, %v943
    %v1003 = vpack.c.bf16 %v754, %v753
    %v1004 = vpack.c.bf16 %v818, %v817
    %v1005 = vpack.c.bf16 %v882, %v881
    %v1006 = vpack.c.bf16 %v946, %v945
    %v1007 = vpack.c.bf16 %v756, %v755
    %v1008 = vpack.c.bf16 %v820, %v819
    %v1009 = vpack.c.bf16 %v884, %v883
    %v1010 = vpack.c.bf16 %v948, %v947
    %v1011 = vpack.c.bf16 %v758, %v757
    %v1012 = vpack.c.bf16 %v822, %v821
    %v1013 = vpack.c.bf16 %v886, %v885
    %v1014 = vpack.c.bf16 %v950, %v949
    %v1015 = vpack.c.bf16 %v776, %v775
    %v1016 = vpack.c.bf16 %v840, %v839
    %v1017 = vpack.c.bf16 %v904, %v903
    %v1018 = vpack.c.bf16 %v968, %v967
    %v1019 = vpack.c.bf16 %v778, %v777
    %v1020 = vpack.c.bf16 %v842, %v841
    %v1021 = vpack.c.bf16 %v906, %v905
    %v1022 = vpack.c.bf16 %v970, %v969
    %v1023 = vpack.c.bf16 %v780, %v779
    %v1024 = vpack.c.bf16 %v844, %v843
    %v1025 = vpack.c.bf16 %v908, %v907
    %v1026 = vpack.c.bf16 %v972, %v971
    %v1027 = vpack.c.bf16 %v782, %v781
    %v1028 = vpack.c.bf16 %v846, %v845
    %v1029 = vpack.c.bf16 %v910, %v909
    %v1030 = vpack.c.bf16 %v974, %v973
    %v1031 = vpack.c.bf16 %v784, %v783
    %v1032 = vpack.c.bf16 %v848, %v847
    %v1033 = vpack.c.bf16 %v912, %v911
    %v1034 = vpack.c.bf16 %v976, %v975
    %v1035 = vpack.c.bf16 %v786, %v785
    %v1036 = vpack.c.bf16 %v850, %v849
    %v1037 = vpack.c.bf16 %v914, %v913
    %v1038 = vpack.c.bf16 %v978, %v977
    %v1039 = vpack.c.bf16 %v788, %v787
    %v1040 = vpack.c.bf16 %v852, %v851
    %v1041 = vpack.c.bf16 %v916, %v915
    %v1042 = vpack.c.bf16 %v980, %v979
    %v1043 = vpack.c.bf16 %v790, %v789
    %v1044 = vpack.c.bf16 %v854, %v853
    %v1045 = vpack.c.bf16 %v918, %v917
    %v1046 = vpack.c.bf16 %v982, %v981
    %v1111 = vunpack.c.l.b16 %v983
    %v1112 = vunpack.c.l.b16 %v984
    %v1113 = vunpack.c.l.b16 %v985
    %v1114 = vunpack.c.l.b16 %v986
    %v1115 = vunpack.c.h.b16 %v983
    %v1116 = vunpack.c.h.b16 %v984
    %v1117 = vunpack.c.h.b16 %v985
    %v1118 = vunpack.c.h.b16 %v986
    %v1119 = vunpack.c.l.b16 %v987
    %v1120 = vunpack.c.l.b16 %v988
    %v1121 = vunpack.c.l.b16 %v989
    %v1122 = vunpack.c.l.b16 %v990
    %v1123 = vunpack.c.h.b16 %v987
    %v1124 = vunpack.c.h.b16 %v988
    %v1125 = vunpack.c.h.b16 %v989
    %v1126 = vunpack.c.h.b16 %v990
    %v1127 = vunpack.c.l.b16 %v991
    %v1128 = vunpack.c.l.b16 %v992
    %v1129 = vunpack.c.l.b16 %v993
    %v1130 = vunpack.c.l.b16 %v994
    %v1131 = vunpack.c.h.b16 %v991
    %v1132 = vunpack.c.h.b16 %v992
    %v1133 = vunpack.c.h.b16 %v993
    %v1134 = vunpack.c.h.b16 %v994
    %v1135 = vunpack.c.l.b16 %v995
    %v1136 = vunpack.c.l.b16 %v996
    %v1137 = vunpack.c.l.b16 %v997
    %v1138 = vunpack.c.l.b16 %v998
    %v1139 = vunpack.c.h.b16 %v995
    %v1140 = vunpack.c.h.b16 %v996
    %v1141 = vunpack.c.h.b16 %v997
    %v1142 = vunpack.c.h.b16 %v998
    %v1143 = vunpack.c.l.b16 %v999
    %v1144 = vunpack.c.l.b16 %v1000
    %v1145 = vunpack.c.l.b16 %v1001
    %v1146 = vunpack.c.l.b16 %v1002
    %v1147 = vunpack.c.h.b16 %v999
    %v1148 = vunpack.c.h.b16 %v1000
    %v1149 = vunpack.c.h.b16 %v1001
    %v1150 = vunpack.c.h.b16 %v1002
    %v1151 = vunpack.c.l.b16 %v1003
    %v1152 = vunpack.c.l.b16 %v1004
    %v1153 = vunpack.c.l.b16 %v1005
    %v1154 = vunpack.c.l.b16 %v1006
    %v1155 = vunpack.c.h.b16 %v1003
    %v1156 = vunpack.c.h.b16 %v1004
    %v1157 = vunpack.c.h.b16 %v1005
    %v1158 = vunpack.c.h.b16 %v1006
    %v1159 = vunpack.c.l.b16 %v1007
    %v1160 = vunpack.c.l.b16 %v1008
    %v1161 = vunpack.c.l.b16 %v1009
    %v1162 = vunpack.c.l.b16 %v1010
    %v1163 = vunpack.c.h.b16 %v1007
    %v1164 = vunpack.c.h.b16 %v1008
    %v1165 = vunpack.c.h.b16 %v1009
    %v1166 = vunpack.c.h.b16 %v1010
    %v1167 = vunpack.c.l.b16 %v1011
    %v1168 = vunpack.c.l.b16 %v1012
    %v1169 = vunpack.c.l.b16 %v1013
    %v1170 = vunpack.c.l.b16 %v1014
    %v1171 = vunpack.c.h.b16 %v1011
    %v1172 = vunpack.c.h.b16 %v1012
    %v1173 = vunpack.c.h.b16 %v1013
    %v1174 = vunpack.c.h.b16 %v1014
    %v1175 = vunpack.c.l.b16 %v1015
    %v1176 = vunpack.c.l.b16 %v1016
    %v1177 = vunpack.c.l.b16 %v1017
    %v1178 = vunpack.c.l.b16 %v1018
    %v1179 = vunpack.c.h.b16 %v1015
    %v1180 = vunpack.c.h.b16 %v1016
    %v1181 = vunpack.c.h.b16 %v1017
    %v1182 = vunpack.c.h.b16 %v1018
    %v1183 = vunpack.c.l.b16 %v1019
    %v1184 = vunpack.c.l.b16 %v1020
    %v1185 = vunpack.c.l.b16 %v1021
    %v1186 = vunpack.c.l.b16 %v1022
    %v1187 = vunpack.c.h.b16 %v1019
    %v1188 = vunpack.c.h.b16 %v1020
    %v1189 = vunpack.c.h.b16 %v1021
    %v1190 = vunpack.c.h.b16 %v1022
    %v1191 = vunpack.c.l.b16 %v1023
    %v1192 = vunpack.c.l.b16 %v1024
    %v1193 = vunpack.c.l.b16 %v1025
    %v1194 = vunpack.c.l.b16 %v1026
    %v1195 = vunpack.c.h.b16 %v1023
    %v1196 = vunpack.c.h.b16 %v1024
    %v1197 = vunpack.c.h.b16 %v1025
    %v1198 = vunpack.c.h.b16 %v1026
    %v1199 = vunpack.c.l.b16 %v1027
    %v1200 = vunpack.c.l.b16 %v1028
    %v1201 = vunpack.c.l.b16 %v1029
    %v1202 = vunpack.c.l.b16 %v1030
    %v1203 = vunpack.c.h.b16 %v1027
    %v1204 = vunpack.c.h.b16 %v1028
    %v1205 = vunpack.c.h.b16 %v1029
    %v1206 = vunpack.c.h.b16 %v1030
    %v1207 = vunpack.c.l.b16 %v1031
    %v1208 = vunpack.c.l.b16 %v1032
    %v1209 = vunpack.c.l.b16 %v1033
    %v1210 = vunpack.c.l.b16 %v1034
    %v1211 = vunpack.c.h.b16 %v1031
    %v1212 = vunpack.c.h.b16 %v1032
    %v1213 = vunpack.c.h.b16 %v1033
    %v1214 = vunpack.c.h.b16 %v1034
    %v1215 = vunpack.c.l.b16 %v1035
    %v1216 = vunpack.c.l.b16 %v1036
    %v1217 = vunpack.c.l.b16 %v1037
    %v1218 = vunpack.c.l.b16 %v1038
    %v1219 = vunpack.c.h.b16 %v1035
    %v1220 = vunpack.c.h.b16 %v1036
    %v1221 = vunpack.c.h.b16 %v1037
    %v1222 = vunpack.c.h.b16 %v1038
    %v1223 = vunpack.c.l.b16 %v1039
    %v1224 = vunpack.c.l.b16 %v1040
    %v1225 = vunpack.c.l.b16 %v1041
    %v1226 = vunpack.c.l.b16 %v1042
    %v1227 = vunpack.c.h.b16 %v1039
    %v1228 = vunpack.c.h.b16 %v1040
    %v1229 = vunpack.c.h.b16 %v1041
    %v1230 = vunpack.c.h.b16 %v1042
    %v1231 = vunpack.c.l.b16 %v1043
    %v1232 = vunpack.c.l.b16 %v1044
    %v1233 = vunpack.c.l.b16 %v1045
    %v1234 = vunpack.c.l.b16 %v1046
    %v1235 = vunpack.c.h.b16 %v1043
    %v1236 = vunpack.c.h.b16 %v1044
    %v1237 = vunpack.c.h.b16 %v1045
    %v1238 = vunpack.c.h.b16 %v1046
    %v1239 = vpack.c.b16 %v1112, %v1111
    %v1240 = vpack.c.b16 %v1114, %v1113
    %v1241 = vpack.c.b16 %v1116, %v1115
    %v1242 = vpack.c.b16 %v1118, %v1117
    %v1243 = vpack.c.b16 %v1120, %v1119
    %v1244 = vpack.c.b16 %v1122, %v1121
    %v1245 = vpack.c.b16 %v1124, %v1123
    %v1246 = vpack.c.b16 %v1126, %v1125
    %v1247 = vpack.c.b16 %v1128, %v1127
    %v1248 = vpack.c.b16 %v1130, %v1129
    %v1249 = vpack.c.b16 %v1132, %v1131
    %v1250 = vpack.c.b16 %v1134, %v1133
    %v1251 = vpack.c.b16 %v1136, %v1135
    %v1252 = vpack.c.b16 %v1138, %v1137
    %v1253 = vpack.c.b16 %v1140, %v1139
    %v1254 = vpack.c.b16 %v1142, %v1141
    %v1255 = vpack.c.b16 %v1144, %v1143
    %v1256 = vpack.c.b16 %v1146, %v1145
    %v1257 = vpack.c.b16 %v1148, %v1147
    %v1258 = vpack.c.b16 %v1150, %v1149
    %v1259 = vpack.c.b16 %v1152, %v1151
    %v1260 = vpack.c.b16 %v1154, %v1153
    %v1261 = vpack.c.b16 %v1156, %v1155
    %v1262 = vpack.c.b16 %v1158, %v1157
    %v1263 = vpack.c.b16 %v1160, %v1159
    %v1264 = vpack.c.b16 %v1162, %v1161
    %v1265 = vpack.c.b16 %v1164, %v1163
    %v1266 = vpack.c.b16 %v1166, %v1165
    %v1267 = vpack.c.b16 %v1168, %v1167
    %v1268 = vpack.c.b16 %v1170, %v1169
    %v1269 = vpack.c.b16 %v1172, %v1171
    %v1270 = vpack.c.b16 %v1174, %v1173
    %v1271 = vpack.c.b16 %v1176, %v1175
    %v1272 = vpack.c.b16 %v1178, %v1177
    %v1273 = vpack.c.b16 %v1180, %v1179
    %v1274 = vpack.c.b16 %v1182, %v1181
    %v1275 = vpack.c.b16 %v1184, %v1183
    %v1276 = vpack.c.b16 %v1186, %v1185
    %v1277 = vpack.c.b16 %v1188, %v1187
    %v1278 = vpack.c.b16 %v1190, %v1189
    %v1279 = vpack.c.b16 %v1192, %v1191
    %v1280 = vpack.c.b16 %v1194, %v1193
    %v1281 = vpack.c.b16 %v1196, %v1195
    %v1282 = vpack.c.b16 %v1198, %v1197
    %v1283 = vpack.c.b16 %v1200, %v1199
    %v1284 = vpack.c.b16 %v1202, %v1201
    %v1285 = vpack.c.b16 %v1204, %v1203
    %v1286 = vpack.c.b16 %v1206, %v1205
    %v1287 = vpack.c.b16 %v1208, %v1207
    %v1288 = vpack.c.b16 %v1210, %v1209
    %v1289 = vpack.c.b16 %v1212, %v1211
    %v1290 = vpack.c.b16 %v1214, %v1213
    %v1291 = vpack.c.b16 %v1216, %v1215
    %v1292 = vpack.c.b16 %v1218, %v1217
    %v1293 = vpack.c.b16 %v1220, %v1219
    %v1294 = vpack.c.b16 %v1222, %v1221
    %v1295 = vpack.c.b16 %v1224, %v1223
    %v1296 = vpack.c.b16 %v1226, %v1225
    %v1297 = vpack.c.b16 %v1228, %v1227
    %v1298 = vpack.c.b16 %v1230, %v1229
    %v1299 = vpack.c.b16 %v1232, %v1231
    %v1300 = vpack.c.b16 %v1234, %v1233
    %v1301 = vpack.c.b16 %v1236, %v1235
    %v1302 = vpack.c.b16 %v1238, %v1237
    %1367 = vst [vmem:[#allocation5] sm:$0xff] %v1239
    %1368 = vst [vmem:[#allocation5 + $0x8] sm:$0xff] %v1240
    %1369 = vst [vmem:[#allocation5 + $0x10] sm:$0xff] %v1241
    %1370 = vst [vmem:[#allocation5 + $0x18] sm:$0xff] %v1242
    %1371 = vst [vmem:[#allocation5 + $0x20] sm:$0xff] %v1243
    %1372 = vst [vmem:[#allocation5 + $0x28] sm:$0xff] %v1244
    %1373 = vst [vmem:[#allocation5 + $0x30] sm:$0xff] %v1245
    %1374 = vst [vmem:[#allocation5 + $0x38] sm:$0xff] %v1246
    %1375 = vst [vmem:[#allocation5 + $0x40] sm:$0xff] %v1247
    %1376 = vst [vmem:[#allocation5 + $0x48] sm:$0xff] %v1248
    %1377 = vst [vmem:[#allocation5 + $0x50] sm:$0xff] %v1249
    %1378 = vst [vmem:[#allocation5 + $0x58] sm:$0xff] %v1250
    %1379 = vst [vmem:[#allocation5 + $0x60] sm:$0xff] %v1251
    %1380 = vst [vmem:[#allocation5 + $0x68] sm:$0xff] %v1252
    %1381 = vst [vmem:[#allocation5 + $0x70] sm:$0xff] %v1253
    %1382 = vst [vmem:[#allocation5 + $0x78] sm:$0xff] %v1254
    %1383 = vst [vmem:[#allocation5 + $0x80] sm:$0xff] %v1255
    %1384 = vst [vmem:[#allocation5 + $0x88] sm:$0xff] %v1256
    %1385 = vst [vmem:[#allocation5 + $0x90] sm:$0xff] %v1257
    %1386 = vst [vmem:[#allocation5 + $0x98] sm:$0xff] %v1258
    %1387 = vst [vmem:[#allocation5 + $0xa0] sm:$0xff] %v1259
    %1388 = vst [vmem:[#allocation5 + $0xa8] sm:$0xff] %v1260
    %1389 = vst [vmem:[#allocation5 + $0xb0] sm:$0xff] %v1261
    %1390 = vst [vmem:[#allocation5 + $0xb8] sm:$0xff] %v1262
    %1391 = vst [vmem:[#allocation5 + $0xc0] sm:$0xff] %v1263
    %1392 = vst [vmem:[#allocation5 + $0xc8] sm:$0xff] %v1264
    %1393 = vst [vmem:[#allocation5 + $0xd0] sm:$0xff] %v1265
    %1394 = vst [vmem:[#allocation5 + $0xd8] sm:$0xff] %v1266
    %1395 = vst [vmem:[#allocation5 + $0xe0] sm:$0xff] %v1267
    %1396 = vst [vmem:[#allocation5 + $0xe8] sm:$0xff] %v1268
    %1397 = vst [vmem:[#allocation5 + $0xf0] sm:$0xff] %v1269
    %1398 = vst [vmem:[#allocation5 + $0xf8] sm:$0xff] %v1270
    %1399 = vst [vmem:[#allocation5 + $0x100] sm:$0xff] %v1271
    %1400 = vst [vmem:[#allocation5 + $0x108] sm:$0xff] %v1272
    %1401 = vst [vmem:[#allocation5 + $0x110] sm:$0xff] %v1273
    %1402 = vst [vmem:[#allocation5 + $0x118] sm:$0xff] %v1274
    %1403 = vst [vmem:[#allocation5 + $0x120] sm:$0xff] %v1275
    %1404 = vst [vmem:[#allocation5 + $0x128] sm:$0xff] %v1276
    %1405 = vst [vmem:[#allocation5 + $0x130] sm:$0xff] %v1277
    %1406 = vst [vmem:[#allocation5 + $0x138] sm:$0xff] %v1278
    %1407 = vst [vmem:[#allocation5 + $0x140] sm:$0xff] %v1279
    %1408 = vst [vmem:[#allocation5 + $0x148] sm:$0xff] %v1280
    %1409 = vst [vmem:[#allocation5 + $0x150] sm:$0xff] %v1281
    %1410 = vst [vmem:[#allocation5 + $0x158] sm:$0xff] %v1282
    %1411 = vst [vmem:[#allocation5 + $0x160] sm:$0xff] %v1283
    %1412 = vst [vmem:[#allocation5 + $0x168] sm:$0xff] %v1284
    %1413 = vst [vmem:[#allocation5 + $0x170] sm:$0xff] %v1285
    %1414 = vst [vmem:[#allocation5 + $0x178] sm:$0xff] %v1286
    %1415 = vst [vmem:[#allocation5 + $0x180] sm:$0xff] %v1287
    %1416 = vst [vmem:[#allocation5 + $0x188] sm:$0xff] %v1288
    %1417 = vst [vmem:[#allocation5 + $0x190] sm:$0xff] %v1289
    %1418 = vst [vmem:[#allocation5 + $0x198] sm:$0xff] %v1290
    %1419 = vst [vmem:[#allocation5 + $0x1a0] sm:$0xff] %v1291
    %1420 = vst [vmem:[#allocation5 + $0x1a8] sm:$0xff] %v1292
    %1421 = vst [vmem:[#allocation5 + $0x1b0] sm:$0xff] %v1293
    %1422 = vst [vmem:[#allocation5 + $0x1b8] sm:$0xff] %v1294
    %1423 = vst [vmem:[#allocation5 + $0x1c0] sm:$0xff] %v1295
    %1424 = vst [vmem:[#allocation5 + $0x1c8] sm:$0xff] %v1296
    %1425 = vst [vmem:[#allocation5 + $0x1d0] sm:$0xff] %v1297
    %1426 = vst [vmem:[#allocation5 + $0x1d8] sm:$0xff] %v1298
    %1427 = vst [vmem:[#allocation5 + $0x1e0] sm:$0xff] %v1299
    %1428 = vst [vmem:[#allocation5 + $0x1e8] sm:$0xff] %v1300
    %1429 = vst [vmem:[#allocation5 + $0x1f0] sm:$0xff] %v1301
    %1430 = vst [vmem:[#allocation5 + $0x1f8] sm:$0xff] %v1302
    // Predicated region
    $region10: #{tpu_custom_call.1} parent=1 // pred_check
      _
    $region11: #{tpu_custom_call.1} parent=1 // pred_check_branch
      %1432 = sbr.rel (0) target = $region13
    $region12: #{tpu_custom_call.1} parent=1 // pred_region
      %s1434 = ssub.s32 8192, 8192
      %1435 = vsyncadd [#allocation4], %s1434
      %s1436 = sshll.u32 [#allocation5], 4
      %s1437 = int_to_ptr.vmem [resolvable:$true] %s1436
      %1442 = dma.vmem_to_hbm [thread:$0]  %s1437, 8192, %s1, [#allocation4], 256, 256, 16
    $region13: #{tpu_custom_call.1} parent=1 // pred_fallthru
      _
    // Predicated region
    $region14: #{tpu_custom_call.1} parent=1 // pred_check
      _
    $region15: #{tpu_custom_call.1} parent=1 // pred_check_branch
      %1444 = sbr.rel (0) target = $region17
    $region16: #{tpu_custom_call.1} parent=1 // pred_region
      %1445 = dma.done [#allocation4], 8192
    $region17: #{tpu_custom_call.1} parent=1 // pred_fallthru
      _
    %1446 = vsyncpa [#allocation3], 1
    %1447 = vsyncpa [#allocation4], 1

</llo_original>
